<compile_context>
chip_gen: v6e
topology: v6e:2x2x1
jax: 0.10.0
libtpu: 0.0.40
codegen_flags: <defaults>
</compile_context>

<pallas_src>
import jax
import jax.numpy as jnp
from jax.experimental import pallas as pl
from jax.experimental.pallas import tpu as pltpu  # noqa: F401


def _dot_attn_kernel(hid_ref, enc_ref, out_ref):
    """hid_ref: (B, H); enc_ref: (L, B, H); out_ref: (B, 1, L) attn weights."""
    h = hid_ref[...]                                      # (B, H)
    enc = enc_ref[...]                                    # (L, B, H)

    # Dot-score energies, pure VPU: one elementwise multiply over the whole
    # (L, B, H) block and one lane-axis reduce over H.  No MXU, no per-batch
    # sublane slices, no concatenate.
    scores_lb = jnp.sum(enc * h[None, :, :], axis=-1)     # (L, B)
    scores = scores_lb.T                                  # (B, L) tiny XLU transpose

    # Numerically stable softmax over L (lane axis).  Divide replaced by an EUP
    # reciprocal seed + one Newton-Raphson refinement (~f32 accuracy).
    m = jnp.max(scores, axis=1, keepdims=True)            # (B, 1)
    p = jnp.exp(scores - m)                               # (B, L)
    denom = jnp.sum(p, axis=1, keepdims=True)             # (B, 1)
    inv = pl.reciprocal(denom, approx=True)
    inv = inv * (2.0 - denom * inv)                       # Newton step

    # Store the final (B, 1, L) layout directly — no wrapper unsqueeze needed.
    out_ref[:, 0, :] = p * inv


def attn_forward(hidden, encoder_outputs):
    """Pallas implementation of Attn.forward with method='dot'.

    hidden:          (1, B, H) float32
    encoder_outputs: (L, B, H) float32
    returns:         (B, 1, L) float32 attention weights (rows sum to 1)
    """
    L, B, H = encoder_outputs.shape
    assert hidden.shape == (1, B, H)

    hidden_2d = hidden.reshape(B, H)                      # metadata-only squeeze

    return pl.pallas_call(
        _dot_attn_kernel,
        out_shape=jax.ShapeDtypeStruct((B, 1, L), jnp.float32),
    )(hidden_2d, encoder_outputs)


def _reference(hidden, encoder_outputs):
    """Pure-JAX mirror of the PyTorch forward (dot attention), f32 throughout."""
    energies = jnp.sum(hidden * encoder_outputs, axis=2)  # (L, B)
    weights = jax.nn.softmax(energies.T, axis=1)          # (B, L)
    return weights[:, None, :]                            # (B, 1, L)


if __name__ == "__main__":
    B, H, L = 2, 32, 8        # batch, hidden size, encoder sequence length

    key = jax.random.PRNGKey(0)
    k_h, k_e = jax.random.split(key)
    hidden = jax.random.uniform(k_h, (1, B, H), jnp.float32, -1.0, 1.0)
    encoder_outputs = jax.random.uniform(k_e, (L, B, H), jnp.float32, -1.0, 1.0)

    attn_weights = attn_forward(hidden, encoder_outputs)
    jax.block_until_ready(attn_weights)

    ref = _reference(hidden, encoder_outputs)
    assert attn_weights.shape == (B, 1, L)
    # VPU mul + lane-reduce matches the reference contraction path, so the
    # tolerance can be tight (no MXU multi-pass f32 decomposition involved).
    assert jnp.allclose(attn_weights, ref, atol=1e-5, rtol=1e-5), \
        float(jnp.max(jnp.abs(attn_weights - ref)))
    # Softmax rows must normalize to 1 (precision-independent structural check).
    assert jnp.allclose(jnp.sum(attn_weights, axis=-1), 1.0, atol=1e-5)

    print("KERNEL_OK")
</pallas_src>

<mosaic_0001>
module attributes {stable_mosaic.version = 11 : i64} {
  func.func @_dot_attn_kernel(%arg0: memref<2x32xf32, #tpu.memory_space<vmem>>, %arg1: memref<8x2x32xf32, #tpu.memory_space<vmem>>, %arg2: memref<2x1x8xf32, #tpu.memory_space<vmem>>) attributes {dimension_semantics = [], scalar_prefetch = 0 : i64, scratch_operands = 0 : i64, tpu.core_type = #tpu.core_type<tc>} {
    %c0 = arith.constant 0 : index
    %c0_0 = arith.constant 0 : index
    %0 = vector.load %arg0[%c0, %c0_0] : memref<2x32xf32, #tpu.memory_space<vmem>>, vector<2x32xf32>
    %c0_1 = arith.constant 0 : index
    %c0_2 = arith.constant 0 : index
    %c0_3 = arith.constant 0 : index
    %1 = vector.load %arg1[%c0_1, %c0_2, %c0_3] : memref<8x2x32xf32, #tpu.memory_space<vmem>>, vector<8x2x32xf32>
    %2 = vector.shape_cast %0 : vector<2x32xf32> to vector<1x2x32xf32>
    %3 = vector.broadcast %2 : vector<1x2x32xf32> to vector<8x2x32xf32>
    %4 = arith.mulf %1, %3 : vector<8x2x32xf32>
    %cst = arith.constant dense<0.000000e+00> : vector<8x2xf32>
    %5 = vector.multi_reduction <add>, %4, %cst [2] : vector<8x2x32xf32> to vector<8x2xf32>
    %6 = tpu.transpose %5, [1, 0] : vector<8x2xf32> -> vector<2x8xf32>
    %cst_4 = arith.constant dense<0xFF800000> : vector<2xf32>
    %7 = vector.multi_reduction <maximumf>, %6, %cst_4 [1] : vector<2x8xf32> to vector<2xf32>
    %8 = vector.shape_cast %7 : vector<2xf32> to vector<2x1xf32>
    %9 = vector.broadcast %8 : vector<2x1xf32> to vector<2x8xf32>
    %10 = arith.subf %6, %9 : vector<2x8xf32>
    %11 = math.exp %10 : vector<2x8xf32>
    %cst_5 = arith.constant dense<0.000000e+00> : vector<2xf32>
    %12 = vector.multi_reduction <add>, %11, %cst_5 [1] : vector<2x8xf32> to vector<2xf32>
    %13 = vector.shape_cast %12 : vector<2xf32> to vector<2x1xf32>
    %14 = tpu.reciprocal %13 {approx = true} : vector<2x1xf32> -> vector<2x1xf32>
    %15 = arith.mulf %13, %14 : vector<2x1xf32>
    %cst_6 = arith.constant 2.000000e+00 : f32
    %16 = vector.broadcast %cst_6 : f32 to vector<2x1xf32>
    %17 = arith.subf %16, %15 : vector<2x1xf32>
    %18 = arith.mulf %14, %17 : vector<2x1xf32>
    %19 = vector.broadcast %18 : vector<2x1xf32> to vector<2x8xf32>
    %20 = arith.mulf %11, %19 : vector<2x8xf32>
    %c0_7 = arith.constant 0 : index
    %c0_8 = arith.constant 0 : index
    %c0_9 = arith.constant 0 : index
    %21 = vector.load %arg2[%c0_7, %c0_8, %c0_9] : memref<2x1x8xf32, #tpu.memory_space<vmem>>, vector<2x1x8xf32>
    %22 = vector.shape_cast %21 : vector<2x1x8xf32> to vector<2x8xf32>
    %23 = vector.shape_cast %20 : vector<2x8xf32> to vector<2x1x8xf32>
    tpu.vector_store %arg2[%c0_7, %c0_8, %c0_9], %23 {strides = array<i32>} : memref<2x1x8xf32, #tpu.memory_space<vmem>>, vector<2x1x8xf32>,
    return
  }
}

</mosaic_0001>

<llo_original>
// kernel: tpu_custom_call.1
$region0: #{tpu_custom_call.1}
  #allocation0 [shape = 'u32[]', space=smem, size = 0x4, offset = 0x4, fixed_abs, tag = 'smem constant byte address 0x4 - core index']
  #allocation1 [shape = 'u32[144,128]{1,0:T(1,128)}', space=vmem, size = 0x12000, scoped, tag = 'internal scratch']
  %s0 = inlined_call_operand.hbm [shape: f32[2,32], index: 0, kind: input, shape index: {}]
  %s1 = inlined_call_operand.hbm [shape: f32[8,2,32], index: 1, kind: input, shape index: {}]
  %s2 = inlined_call_operand.hbm [shape: f32[2,1,8], index: 2, kind: output, shape index: {}]
  %s3 = sld [smem:[#allocation0]]
  $region26: #{tpu_custom_call.1} parent=0
    _
  %s5 = ssub.s32 1, %s3
  %s6 = scalar_select 0, %s5, %s3
  $region1: #{tpu_custom_call.1} parent=0
    #allocation2 [shape = 'u8[1024]{0}', space=vmem, size = 0x400, scoped, tag = 'input window, operand 0, single buffered']
    #allocation3 [shape = 's32[1]{0}', space=sflag, size = 0x4, scoped, tag = 'scoped memory for tpu_custom_call.1']
    #allocation4 [shape = 's32[1]{0}', space=sflag, size = 0x4, scoped, tag = 'scoped memory for tpu_custom_call.1']
    #allocation5 [shape = 'u8[8192]{0}', space=vmem, size = 0x2000, scoped, tag = 'input window, operand 1, single buffered']
    #allocation6 [shape = 's32[1]{0}', space=sflag, size = 0x4, scoped, tag = 'scoped memory for tpu_custom_call.1']
    #allocation7 [shape = 'u8[1024]{0}', space=vmem, size = 0x400, scoped, tag = 'output window, operand 0, single buffered']
    %7 = vsyncpa [#allocation3], 0
    %8 = vsyncpa [#allocation6], 0
    %9 = vsyncpa [#allocation4], 0
    // Predicated region
    $region2: #{tpu_custom_call.1} parent=1 // pred_check
      _
    $region3: #{tpu_custom_call.1} parent=1 // pred_check_branch
      %11 = sbr.rel (0) target = $region5
    $region4: #{tpu_custom_call.1} parent=1 // pred_region
      %s13 = ssub.s32 32, 32
      %14 = vsyncadd [#allocation3], %s13
      %s16 = sshll.u32 [#allocation2], 4
      %s17 = int_to_ptr.vmem [resolvable:$true] %s16
      %19 = dma.hbm_to_vmem [thread:$0]  %s0, 32, %s17, [#allocation3]
    $region5: #{tpu_custom_call.1} parent=1 // pred_fallthru
      _
    // Predicated region
    $region6: #{tpu_custom_call.1} parent=1 // pred_check
      _
    $region7: #{tpu_custom_call.1} parent=1 // pred_check_branch
      %21 = sbr.rel (0) target = $region9
    $region8: #{tpu_custom_call.1} parent=1 // pred_region
      %s23 = ssub.s32 256, 256
      %24 = vsyncadd [#allocation6], %s23
      %s25 = sshll.u32 [#allocation5], 4
      %s26 = int_to_ptr.vmem [resolvable:$true] %s25
      %31 = dma.hbm_to_vmem [thread:$0]  %s1, 256, %s26, [#allocation6], 32, 32, 2
    $region9: #{tpu_custom_call.1} parent=1 // pred_fallthru
      _
    // Predicated region
    $region10: #{tpu_custom_call.1} parent=1 // pred_check
      _
    $region11: #{tpu_custom_call.1} parent=1 // pred_check_branch
      %33 = sbr.rel (0) target = $region13
    $region12: #{tpu_custom_call.1} parent=1 // pred_region
      %34 = dma.done [#allocation3], 32
    $region13: #{tpu_custom_call.1} parent=1 // pred_fallthru
      _
    // Predicated region
    $region14: #{tpu_custom_call.1} parent=1 // pred_check
      _
    $region15: #{tpu_custom_call.1} parent=1 // pred_check_branch
      %36 = sbr.rel (0) target = $region17
    $region16: #{tpu_custom_call.1} parent=1 // pred_region
      %37 = dma.done [#allocation6], 256
    $region17: #{tpu_custom_call.1} parent=1 // pred_fallthru
      _
    %v38 = vld [vmem:[#allocation2] sm:$0x3]
    %v39 = vld [vmem:[#allocation5] sm:$0x3]
    %v40 = vld [vmem:[#allocation5 + $0x2] sm:$0x3]
    %v41 = vld [vmem:[#allocation5 + $0x4] sm:$0x3]
    %v42 = vld [vmem:[#allocation5 + $0x6] sm:$0x3]
    %v43 = vld [vmem:[#allocation5 + $0x8] sm:$0x3]
    %v44 = vld [vmem:[#allocation5 + $0xa] sm:$0x3]
    %v45 = vld [vmem:[#allocation5 + $0xc] sm:$0x3]
    %v46 = vld [vmem:[#allocation5 + $0xe] sm:$0x3]
    %v47 = vmul.f32 %v39, %v38
    %v48 = vmul.f32 %v40, %v38
    %v49 = vmul.f32 %v41, %v38
    %v50 = vmul.f32 %v42, %v38
    %v51 = vmul.f32 %v43, %v38
    %v52 = vmul.f32 %v44, %v38
    %v53 = vmul.f32 %v45, %v38
    %v54 = vmul.f32 %v46, %v38
    %vm55 = vcmask 254976
    %v56 = vsel %vm55, %v47, 0.0
    %57 = vadd.xlane.f32.xlu0 %v56
    %v58 = vpop.xlane.xlu0 %57
    %v59 = vsel %vm55, %v48, 0.0
    %60 = vadd.xlane.f32.xlu0 %v59
    %v61 = vpop.xlane.xlu0 %60
    %v62 = vsel %vm55, %v49, 0.0
    %63 = vadd.xlane.f32.xlu0 %v62
    %v64 = vpop.xlane.xlu0 %63
    %v65 = vsel %vm55, %v50, 0.0
    %66 = vadd.xlane.f32.xlu0 %v65
    %v67 = vpop.xlane.xlu0 %66
    %v68 = vsel %vm55, %v51, 0.0
    %69 = vadd.xlane.f32.xlu0 %v68
    %v70 = vpop.xlane.xlu0 %69
    %v71 = vsel %vm55, %v52, 0.0
    %72 = vadd.xlane.f32.xlu0 %v71
    %v73 = vpop.xlane.xlu0 %72
    %v74 = vsel %vm55, %v53, 0.0
    %75 = vadd.xlane.f32.xlu0 %v74
    %v76 = vpop.xlane.xlu0 %75
    %v77 = vsel %vm55, %v54, 0.0
    %78 = vadd.xlane.f32.xlu0 %v77
    %v79 = vpop.xlane.xlu0 %78
    %v88 = vlaneseq
    %v89 = vand.u32 %v88, 127
    %v90 = vlaneseq
    %v91 = vshrl.u32 %v90, 7
    %v92 = vsub.s32 %v89, %v91
    %v93 = vrot.slane %v58, %v92
    %v94 = vlaneseq
    %v95 = vshrl.u32 %v94, 7
    %v96 = vsub.s32 %v89, %v95
    %v97 = vrot.slane %v61, %v96
    %v98 = vlaneseq
    %v99 = vshrl.u32 %v98, 7
    %v100 = vsub.s32 %v89, %v99
    %v101 = vrot.slane %v64, %v100
    %v102 = vlaneseq
    %v103 = vshrl.u32 %v102, 7
    %v104 = vsub.s32 %v89, %v103
    %v105 = vrot.slane %v67, %v104
    %v106 = vlaneseq
    %v107 = vshrl.u32 %v106, 7
    %v108 = vsub.s32 %v89, %v107
    %v109 = vrot.slane %v70, %v108
    %v110 = vlaneseq
    %v111 = vshrl.u32 %v110, 7
    %v112 = vsub.s32 %v89, %v111
    %v113 = vrot.slane %v73, %v112
    %v114 = vlaneseq
    %v115 = vshrl.u32 %v114, 7
    %v116 = vsub.s32 %v89, %v115
    %v117 = vrot.slane %v76, %v116
    %v118 = vlaneseq
    %v119 = vshrl.u32 %v118, 7
    %v120 = vsub.s32 %v89, %v119
    %v121 = vrot.slane %v79, %v120
    %vm122 = vcmask 1041409
    %v123 = vsel %vm122, %v97, %v93
    %vm124 = vcmask 1042434
    %v125 = vsel %vm124, %v101, %v123
    %vm126 = vcmask 1043459
    %v127 = vsel %vm126, %v105, %v125
    %vm128 = vcmask 1044484
    %v129 = vsel %vm128, %v109, %v127
    %vm130 = vcmask 1045509
    %v131 = vsel %vm130, %v113, %v129
    %vm132 = vcmask 1046534
    %v133 = vsel %vm132, %v117, %v131
    %vm134 = vcmask 1047559
    %v135 = vsel %vm134, %v121, %v133
    %137 = vxpose.xlu0.b32.start [1/16] %v135, 128
    %138 = vxpose.xlu0.b32.cont [2/16] 0.0, 128
    %139 = vxpose.xlu0.b32.cont [3/16] 0.0, 128
    %140 = vxpose.xlu0.b32.cont [4/16] 0.0, 128
    %141 = vxpose.xlu0.b32.cont [5/16] 0.0, 128
    %142 = vxpose.xlu0.b32.cont [6/16] 0.0, 128
    %143 = vxpose.xlu0.b32.cont [7/16] 0.0, 128
    %144 = vxpose.xlu0.b32.cont [8/16] 0.0, 128
    %145 = vxpose.xlu0.b32.cont [9/16] 0.0, 128
    %146 = vxpose.xlu0.b32.cont [10/16] 0.0, 128
    %147 = vxpose.xlu0.b32.cont [11/16] 0.0, 128
    %148 = vxpose.xlu0.b32.cont [12/16] 0.0, 128
    %149 = vxpose.xlu0.b32.cont [13/16] 0.0, 128
    %150 = vxpose.xlu0.b32.cont [14/16] 0.0, 128
    %151 = vxpose.xlu0.b32.cont [15/16] 0.0, 128
    %152 = vxpose.xlu0.b32.end [16/16] 0.0, 128
    %v153 = vpop.trf.xlu0
    %v154 = vpop.trf.xlu0
    %v155 = vpop.trf.xlu0
    %v156 = vpop.trf.xlu0
    %v157 = vpop.trf.xlu0
    %v158 = vpop.trf.xlu0
    %v159 = vpop.trf.xlu0
    %v160 = vpop.trf.xlu0
    %v161 = vpop.trf.xlu0
    %v162 = vpop.trf.xlu0
    %v163 = vpop.trf.xlu0
    %v164 = vpop.trf.xlu0
    %v165 = vpop.trf.xlu0
    %v166 = vpop.trf.xlu0
    %v167 = vpop.trf.xlu0
    %v168 = vpop.trf.xlu0
    %vm169 = vcmask 58368
    %v170 = vsel %vm169, %v153, -inf
    %171 = vmax.xlane.f32.xlu0 %v170
    %v172 = vpop.xlane.xlu0 %171
    %v173 = vsub.f32 %v153, %v172
    %v174 = vmul.f32 %v173, 1.442695
    %v175 = vpow.pop %v174
    %v176 = vsel %vm169, %v175, 0.0
    %177 = vadd.xlane.f32.xlu0 %v176
    %v178 = vpop.xlane.xlu0 %177
    %v179 = vrcp.pop %v178
    %v180 = vmul.f32 %v178, %v179
    %v181 = vsub.f32 2.0, %v180
    %v182 = vmul.f32 %v179, %v181
    %v183 = vmul.f32 %v175, %v182
    %v186 = vunpack.c.l.s4 1966171168
    %v187 = vunpack.c.0.s8 %v186
    %v188 = vlaneseq
    %v189 = vshrl.u32 %v188, 7
    %v190 = vsub.s32 %v187, %v189
    %v191 = vrot.slane %v183, %v190
    %v192 = vcombine.high %v191, %v191
    %v194 = vunpack.c.l.s4 1966171168
    %v195 = vunpack.c.0.s8 %v194
    %v196 = vlaneseq
    %v197 = vshrl.u32 %v196, 7
    %v198 = vsub.s32 %v195, %v197
    %v199 = vrot.slane %v191, %v198
    %v201 = vunpack.c.l.s4 1966171168
    %v202 = vunpack.c.0.s8 %v201
    %v203 = vlaneseq
    %v204 = vshrl.u32 %v203, 7
    %v205 = vsub.s32 %v202, %v204
    %v206 = vrot.slane %v192, %v205
    %vm209 = vcmask 57344
    %210 = vst.msk [vmem:[#allocation7] sm:$0x1] %vm209, %v199
    %211 = vst.msk [vmem:[#allocation7 + $0x1] sm:$0x1] %vm209, %v206
    // Predicated region
    $region18: #{tpu_custom_call.1} parent=1 // pred_check
      _
    $region19: #{tpu_custom_call.1} parent=1 // pred_check_branch
      %213 = sbr.rel (0) target = $region21
    $region20: #{tpu_custom_call.1} parent=1 // pred_region
      %s215 = ssub.s32 32, 32
      %216 = vsyncadd [#allocation4], %s215
      %s217 = sshll.u32 [#allocation7], 4
      %s218 = int_to_ptr.vmem [resolvable:$true] %s217
      %223 = dma.vmem_to_hbm [thread:$0]  %s218, 32, %s2, [#allocation4], 16, 16, 1
    $region21: #{tpu_custom_call.1} parent=1 // pred_fallthru
      _
    // Predicated region
    $region22: #{tpu_custom_call.1} parent=1 // pred_check
      _
    $region23: #{tpu_custom_call.1} parent=1 // pred_check_branch
      %225 = sbr.rel (0) target = $region25
    $region24: #{tpu_custom_call.1} parent=1 // pred_region
      %226 = dma.done [#allocation4], 32
    $region25: #{tpu_custom_call.1} parent=1 // pred_fallthru
      _
    %227 = vsyncpa [#allocation3], 1
    %228 = vsyncpa [#allocation6], 1
    %229 = vsyncpa [#allocation4], 1

</llo_original>
